<compile_context>
chip_gen: v7x
topology: tpu7x:2x2x1
jax: 0.10.0
libtpu: 0.0.40
codegen_flags: <defaults>
</compile_context>

<pallas_src>
import functools

import jax
import jax.numpy as jnp
from jax.experimental import pallas as pl
from jax.experimental.pallas import tpu as pltpu

EPSILON = 1e-07
_STRIP_ROWS = 256                      # rows per accumulation strip (mult of 32)
_DEFAULT_BLOCK_BYTES = 2 * 1024 * 1024


def _tpu_block_params():
    """(per-input per-block target bytes, vmem_limit_bytes or None) by TPU gen."""
    kind = ""
    try:
        kind = jax.devices()[0].device_kind.lower()
    except Exception:
        pass
    if "v5e" in kind or "v5 lite" in kind or "v5lite" in kind:
        # v5e: 16 MiB scoped-VMEM default; small blocks, don't touch the limit.
        return 1536 * 1024, None
    if "v6" in kind:
        # v6e: ~1.35 TB/s HBM; 4 MiB/input amortizes per-step overhead.
        return 4 * 1024 * 1024, 40 * 1024 * 1024
    if "v7" in kind or "7x" in kind:
        # v7x: ~1.6 TB/s per TC, but only 64 MiB VMEM/TC -> cap at 48 MiB.
        return 6 * 1024 * 1024, 48 * 1024 * 1024
    return _DEFAULT_BLOCK_BYTES, 32 * 1024 * 1024


def _maybe_repack_lane_dense(ph, p):
    """Reshape (and, only when clearly worth it, zero-pad) to a lane-dense slab."""
    n, c = ph.shape
    if c % 128 == 0:
        return ph, p
    total = n * c
    lane_w = next((w for w in (512, 256, 128) if total % w == 0), None)
    flat_ph, flat_p = ph.reshape(-1), p.reshape(-1)
    if lane_w is None:
        pad_c = -(-c // 128) * 128
        nbytes = total * jnp.dtype(ph.dtype).itemsize
        # Padding materializes a copy of both inputs (~extra read+write), so only
        # pay for it when the unpacked lane waste is big (C << 128) or tiny input.
        if pad_c >= 3 * c or nbytes <= (4 << 20):
            lane_w = 128
            padded = -(-total // lane_w) * lane_w
            # Zero pad is exact: 0 * log((0+eps)/(0+eps)) == 0 * log(1) == 0.
            flat_ph = jnp.pad(flat_ph, (0, padded - total))
            flat_p = jnp.pad(flat_p, (0, padded - total))
            total = padded
        else:
            return ph, p
    return (flat_ph.reshape(total // lane_w, lane_w),
            flat_p.reshape(total // lane_w, lane_w))


def _pick_row_tile(n_rows, c, itemsize, pack, target_block_bytes):
    """Rows per block: dtype-pack aligned, ~target bytes, >=2 blocks if possible."""
    rows = target_block_bytes // max(1, c * itemsize)
    # Give the v7x megacore (2 TCs, "parallel" grid axis) at least 2 blocks.
    if rows >= n_rows and n_rows > pack:
        rows = -(-n_rows // 2)
    # Never allocate a block taller than the (pack-rounded) array.
    rows = min(rows, -(-n_rows // pack) * pack)
    align = _STRIP_ROWS if rows >= _STRIP_ROWS else pack
    rows = max(pack, (rows // align) * align)
    return int(rows)


def _kl_partial_kernel(ph_ref, p_ref, out_ref, *,
                       n_rows, row_tile, strip_rows, epsilon):
    c = out_ref.shape[-1]
    ragged = (n_rows % row_tile) != 0
    n_strips = row_tile // strip_rows
    block_row0 = pl.program_id(0) * row_tile

    def strip_partial(s):
        r0 = pl.multiple_of(s * strip_rows, strip_rows)
        ph = ph_ref[pl.ds(r0, strip_rows), :].astype(jnp.float32)
        p = p_ref[pl.ds(r0, strip_rows), :].astype(jnp.float32)
        # Exact-precision divide kept on purpose; pl.reciprocal(approx=True)
        # only pays if the EUP slot binds (v7x + bf16) and it loosens tolerance.
        term = ph * jnp.log((ph + epsilon) / (p + epsilon))
        if ragged:
            # Only the last (partial) grid block has rows >= n_rows.  A single
            # select on `term` discards garbage (incl. NaN) from the pad rows.
            rows = block_row0 + r0 + jax.lax.broadcasted_iota(
                jnp.int32, term.shape, 0)
            term = jnp.where(rows < n_rows, term, 0.0)
        # Fold rows into 8 sublanes with plain VPU adds (no cross-lane reduce).
        return term.reshape(strip_rows // 8, 8, c).sum(axis=0)

    if n_strips == 1:
        out_ref[...] = strip_partial(0)
    else:
        # fori_loop (not a static Python for) bounds the live f32 temporaries
        # to one strip, so the large per-generation row tiles fit in VMEM.
        out_ref[...] = jax.lax.fori_loop(
            1, n_strips, lambda s, acc: acc + strip_partial(s), strip_partial(0))


def kl_loss(pre_hat, pre, *, epsilon=EPSILON, row_tile=None):
    """Pallas TPU implementation of KLLoss.forward.  Returns a scalar (f32)."""
    assert pre_hat.ndim == 2 and pre.shape == pre_hat.shape
    # TODO(synk): the PyTorch jug() softmax/non-negativity check is a host-side
    # assertion that does not change the computed value; omitted here.
    orig_n = pre_hat.shape[0]

    ph, p = _maybe_repack_lane_dense(pre_hat, pre)
    n, c = ph.shape
    itemsize = jnp.dtype(ph.dtype).itemsize
    pack = 8 * max(1, 4 // itemsize)   # 8 (f32), 16 (bf16), 32 (int8/fp8)

    target_bytes, vmem_limit = _tpu_block_params()
    if row_tile is None:
        row_tile = _pick_row_tile(n, c, itemsize, pack, target_bytes)
    assert row_tile % pack == 0, f"row_tile must be a multiple of {pack}"
    strip_rows = _STRIP_ROWS if row_tile % _STRIP_ROWS == 0 else row_tile

    num_blocks = -(-n // row_tile)
    kernel = functools.partial(
        _kl_partial_kernel, n_rows=n, row_tile=row_tile,
        strip_rows=strip_rows, epsilon=epsilon)

    cp_kwargs = dict(dimension_semantics=("parallel",))
    if vmem_limit is not None:
        cp_kwargs["vmem_limit_bytes"] = int(vmem_limit)

    bytes_accessed = 2 * n * c * itemsize + num_blocks * 8 * c * 4
    partials = pl.pallas_call(
        kernel,
        out_shape=jax.ShapeDtypeStruct((num_blocks * 8, c), jnp.float32),
        grid=(num_blocks,),
        in_specs=[
            pl.BlockSpec((row_tile, c), lambda i: (i, 0)),
            pl.BlockSpec((row_tile, c), lambda i: (i, 0)),
        ],
        out_specs=pl.BlockSpec((8, c), lambda i: (i, 0)),
        compiler_params=pltpu.CompilerParams(**cp_kwargs),
        cost_estimate=pl.CostEstimate(
            flops=int(5 * n * c),
            transcendentals=int(n * c),
            bytes_accessed=int(bytes_accessed),
        ),
    )(ph, p)

    # Tiny final tree-reduction + normalization in plain JAX.
    return jnp.sum(partials) / jnp.float32(orig_n)


def _reference(pre_hat, pre, epsilon=EPSILON):
    ph = pre_hat.astype(jnp.float32)
    p = pre.astype(jnp.float32)
    return jnp.sum(
        jnp.sum(ph * jnp.log((ph + epsilon) / (p + epsilon)), axis=1)
    ) / ph.shape[0]


if __name__ == "__main__":
    key = jax.random.PRNGKey(0)
    keys = jax.random.split(key, 8)

    def check(ph, p, rtol=1e-4, atol=1e-6):
        out = jax.block_until_ready(kl_loss(ph, p))
        ref = jax.block_until_ready(_reference(ph, p))
        assert jnp.allclose(out, ref, rtol=rtol, atol=atol), (out, ref)

    # Case 1: small exact-fit shape (N=8, C=128); softmax over dim 0 satisfies
    # the PyTorch jug() contract.
    ph1 = jax.nn.softmax(jax.random.normal(keys[0], (8, 128), jnp.float32), axis=0)
    p1 = jax.nn.softmax(jax.random.normal(keys[1], (8, 128), jnp.float32), axis=0)
    check(ph1, p1)

    # Case 2: classification-like shape (N=50, C=10) — exercises the lane-dense
    # repack with zero-padding plus the ragged-row mask.
    ph2 = jax.nn.softmax(jax.random.normal(keys[2], (50, 10), jnp.float32), axis=0)
    p2 = jax.nn.softmax(jax.random.normal(keys[3], (50, 10), jnp.float32), axis=0)
    check(ph2, p2)

    # Case 3: ragged row count, C multiple of 128 (no repack) — multi-block grid
    # with a masked tail tile.
    ph3 = jax.nn.softmax(jax.random.normal(keys[4], (500, 256), jnp.float32), axis=0)
    p3 = jax.nn.softmax(jax.random.normal(keys[5], (500, 256), jnp.float32), axis=0)
    check(ph3, p3)

    # Case 4: bf16 inputs with unaligned C — exercises the free-reshape repack
    # path and the 16-row packed-dtype tile alignment.
    ph4 = jax.nn.softmax(
        jax.random.normal(keys[6], (64, 96), jnp.float32), axis=0).astype(jnp.bfloat16)
    p4 = jax.nn.softmax(
        jax.random.normal(keys[7], (64, 96), jnp.float32), axis=0).astype(jnp.bfloat16)
    check(ph4, p4)

    print("KERNEL_OK")
</pallas_src>

<mosaic_0001>
module attributes {stable_mosaic.version = 11 : i64} {
  func.func @_kl_partial_kernel(%arg0: i32, %arg1: memref<8x128xf32, #tpu.memory_space<vmem>>, %arg2: memref<8x128xf32, #tpu.memory_space<vmem>>, %arg3: memref<8x128xf32, #tpu.memory_space<vmem>>) attributes {dimension_semantics = [#tpu.dimension_semantics<parallel>], iteration_bounds = array<i64: 1>, scalar_prefetch = 0 : i64, scratch_operands = 0 : i64, tpu.core_type = #tpu.core_type<tc>, window_params = [{transform_indices = @transform_0, window_bounds = array<i64: 8, 128>}, {transform_indices = @transform_1, window_bounds = array<i64: 8, 128>}, {transform_indices = @transform_2, window_bounds = array<i64: 8, 128>}]} {
    %c0_i32 = arith.constant 0 : i32
    %0 = tpu.assume_multiple %c0_i32, 8 : i32
    %1 = arith.index_cast %0 : i32 to index
    %c0 = arith.constant 0 : index
    %2 = vector.load %arg1[%1, %c0] : memref<8x128xf32, #tpu.memory_space<vmem>>, vector<8x128xf32>
    %3 = arith.index_cast %0 : i32 to index
    %c0_0 = arith.constant 0 : index
    %4 = vector.load %arg2[%3, %c0_0] : memref<8x128xf32, #tpu.memory_space<vmem>>, vector<8x128xf32>
    %cst = arith.constant 1.000000e-07 : f32
    %5 = vector.broadcast %cst : f32 to vector<8x128xf32>
    %6 = arith.addf %2, %5 : vector<8x128xf32>
    %cst_1 = arith.constant 1.000000e-07 : f32
    %7 = vector.broadcast %cst_1 : f32 to vector<8x128xf32>
    %8 = arith.addf %4, %7 : vector<8x128xf32>
    %9 = arith.divf %6, %8 : vector<8x128xf32>
    %10 = math.log %9 : vector<8x128xf32>
    %11 = arith.mulf %2, %10 : vector<8x128xf32>
    %12 = vector.shape_cast %11 : vector<8x128xf32> to vector<1x8x128xf32>
    %cst_2 = arith.constant dense<0.000000e+00> : vector<8x128xf32>
    %13 = vector.multi_reduction <add>, %12, %cst_2 [0] : vector<1x8x128xf32> to vector<8x128xf32>
    %c0_3 = arith.constant 0 : index
    %c0_4 = arith.constant 0 : index
    %14 = vector.load %arg3[%c0_3, %c0_4] : memref<8x128xf32, #tpu.memory_space<vmem>>, vector<8x128xf32>
    tpu.vector_store %arg3[%c0_3, %c0_4], %13 {strides = array<i32>} : memref<8x128xf32, #tpu.memory_space<vmem>>, vector<8x128xf32>,
    return
  }
  func.func @transform_0(%arg0: i32) -> (i32, i32) {
    %c0_i32 = arith.constant 0 : i32
    %c0_i32_0 = arith.constant 0 : i32
    return %arg0, %c0_i32 : i32, i32
  }
  func.func @transform_1(%arg0: i32) -> (i32, i32) {
    %c0_i32 = arith.constant 0 : i32
    %c0_i32_0 = arith.constant 0 : i32
    return %arg0, %c0_i32 : i32, i32
  }
  func.func @transform_2(%arg0: i32) -> (i32, i32) {
    %c0_i32 = arith.constant 0 : i32
    %c0_i32_0 = arith.constant 0 : i32
    return %arg0, %c0_i32 : i32, i32
  }
}

</mosaic_0001>

<llo_original>
// kernel: tpu_custom_call.1
$region0: #{tpu_custom_call.1}
  #allocation0 [shape = 'u32[]', space=smem, size = 0x4, offset = 0x4, fixed_abs, tag = 'smem constant byte address 0x4 - core index']
  #allocation1 [shape = 'u32[144,128]{1,0:T(1,128)}', space=vmem, size = 0x12000, scoped, tag = 'internal scratch']
  %s0 = inlined_call_operand.hbm [shape: f32[8,128], index: 0, kind: input, shape index: {}]
  %s1 = inlined_call_operand.hbm [shape: f32[8,128], index: 1, kind: input, shape index: {}]
  %s2 = inlined_call_operand.hbm [shape: f32[8,128], index: 2, kind: output, shape index: {}]
  %s3 = sld [smem:[#allocation0]]
  $region26: #{tpu_custom_call.1} parent=0
    _
  %s5 = ssub.s32 1, %s3
  %s6 = scalar_select 0, %s5, %s3
  $region1: #{tpu_custom_call.1} parent=0
    #allocation2 [shape = 'u8[4096]{0}', space=vmem, size = 0x1000, scoped, tag = 'input window, operand 0, single buffered']
    #allocation3 [shape = 's32[1]{0}', space=sflag, size = 0x4, scoped, tag = 'scoped memory for tpu_custom_call.1']
    #allocation4 [shape = 's32[1]{0}', space=sflag, size = 0x4, scoped, tag = 'scoped memory for tpu_custom_call.1']
    #allocation5 [shape = 'u8[4096]{0}', space=vmem, size = 0x1000, scoped, tag = 'input window, operand 1, single buffered']
    #allocation6 [shape = 's32[1]{0}', space=sflag, size = 0x4, scoped, tag = 'scoped memory for tpu_custom_call.1']
    #allocation7 [shape = 'u8[4096]{0}', space=vmem, size = 0x1000, scoped, tag = 'output window, operand 0, single buffered']
    %7 = vsyncpa [#allocation3], 0
    %8 = vsyncpa [#allocation6], 0
    %9 = vsyncpa [#allocation4], 0
    // Predicated region
    $region2: #{tpu_custom_call.1} parent=1 // pred_check
      _
    $region3: #{tpu_custom_call.1} parent=1 // pred_check_branch
      %11 = sbr.rel (0) target = $region5
    $region4: #{tpu_custom_call.1} parent=1 // pred_region
      %s13 = ssub.s32 128, 128
      %14 = vsyncadd [#allocation3], %s13
      %s16 = sshll.u32 [#allocation2], 4
      %s17 = int_to_ptr.vmem [resolvable:$true] %s16
      %19 = dma.hbm_to_vmem [thread:$0]  %s0, 128, %s17, [#allocation3]
    $region5: #{tpu_custom_call.1} parent=1 // pred_fallthru
      _
    // Predicated region
    $region6: #{tpu_custom_call.1} parent=1 // pred_check
      _
    $region7: #{tpu_custom_call.1} parent=1 // pred_check_branch
      %21 = sbr.rel (0) target = $region9
    $region8: #{tpu_custom_call.1} parent=1 // pred_region
      %s23 = ssub.s32 128, 128
      %24 = vsyncadd [#allocation6], %s23
      %s26 = sshll.u32 [#allocation5], 4
      %s27 = int_to_ptr.vmem [resolvable:$true] %s26
      %29 = dma.hbm_to_vmem [thread:$0]  %s1, 128, %s27, [#allocation6]
    $region9: #{tpu_custom_call.1} parent=1 // pred_fallthru
      _
    // Predicated region
    $region10: #{tpu_custom_call.1} parent=1 // pred_check
      _
    $region11: #{tpu_custom_call.1} parent=1 // pred_check_branch
      %31 = sbr.rel (0) target = $region13
    $region12: #{tpu_custom_call.1} parent=1 // pred_region
      %32 = dma.done [#allocation3], 128
    $region13: #{tpu_custom_call.1} parent=1 // pred_fallthru
      _
    // Predicated region
    $region14: #{tpu_custom_call.1} parent=1 // pred_check
      _
    $region15: #{tpu_custom_call.1} parent=1 // pred_check_branch
      %34 = sbr.rel (0) target = $region17
    $region16: #{tpu_custom_call.1} parent=1 // pred_region
      %35 = dma.done [#allocation6], 128
    $region17: #{tpu_custom_call.1} parent=1 // pred_fallthru
      _
    %v36 = vld [vmem:[#allocation2] sm:$0xff]
    %v37 = vld [vmem:[#allocation5] sm:$0xff]
    %v38 = vadd.f32 %v36, 1e-07
    %v39 = vadd.f32 %v37, 1e-07
    %v40 = vrcp.pop %v39
    %v41 = vmul.f32 %v38, %v40
    %v42 = vlog2.pop %v41
    %v43 = vmul.f32 %v42, 0.6931472
    %v44 = vmul.f32 %v36, %v43
    %v45 = vadd.f32 %v44, 0.0
    %46 = vst [vmem:[#allocation7] sm:$0xff] %v45
    // Predicated region
    $region18: #{tpu_custom_call.1} parent=1 // pred_check
      _
    $region19: #{tpu_custom_call.1} parent=1 // pred_check_branch
      %48 = sbr.rel (0) target = $region21
    $region20: #{tpu_custom_call.1} parent=1 // pred_region
      %s50 = ssub.s32 128, 128
      %51 = vsyncadd [#allocation4], %s50
      %s53 = sshll.u32 [#allocation7], 4
      %s54 = int_to_ptr.vmem [resolvable:$true] %s53
      %56 = dma.vmem_to_hbm [thread:$0]  %s54, 128, %s2, [#allocation4]
    $region21: #{tpu_custom_call.1} parent=1 // pred_fallthru
      _
    // Predicated region
    $region22: #{tpu_custom_call.1} parent=1 // pred_check
      _
    $region23: #{tpu_custom_call.1} parent=1 // pred_check_branch
      %58 = sbr.rel (0) target = $region25
    $region24: #{tpu_custom_call.1} parent=1 // pred_region
      %59 = dma.done [#allocation4], 128
    $region25: #{tpu_custom_call.1} parent=1 // pred_fallthru
      _
    %60 = vsyncpa [#allocation3], 1
    %61 = vsyncpa [#allocation6], 1
    %62 = vsyncpa [#allocation4], 1

</llo_original>
